<compile_context>
chip_gen: v5e
topology: v5e:2x2
jax: 0.10.0
libtpu: 0.0.40
codegen_flags: <defaults>
</compile_context>

<pallas_src>
import functools

import jax
import jax.numpy as jnp
from jax import lax
from jax.experimental import pallas as pl
from jax.experimental.pallas import tpu as pltpu


def _round_up(x, m):
    return ((x + m - 1) // m) * m


def q_kernel(s_ref, a_ref,
             w1s_ref, w1a_ref, b1_ref,
             w2_ref, b2_ref,
             w3_ref, b3_ref,
             o_ref):
    """One batch tile of the Q critic, computed in (features, batch) layout."""
    # fc1: contract the feature axis of both operands ("A @ B^T"), so the raw
    # (TB, S)/(TB, A) activation tiles are consumed directly -> (H, TB).
    dn = (((1,), (1,)), ((), ()))
    h1 = (lax.dot_general(w1s_ref[...], s_ref[...], dn,
                          preferred_element_type=jnp.float32)
          + lax.dot_general(w1a_ref[...], a_ref[...], dn,
                            preferred_element_type=jnp.float32)
          + b1_ref[...])                                    # (H, TB)
    h1 = jnp.maximum(h1, 0.0)

    # fc2 + relu
    h2 = jnp.dot(w2_ref[...], h1, preferred_element_type=jnp.float32) + b2_ref[...]
    h2 = jnp.maximum(h2, 0.0)                               # (H, TB)

    # fc3 + sigmoid; lane-dense (1, TB) result.  b3 is an SMEM scalar.
    z = jnp.dot(w3_ref[...], h2, preferred_element_type=jnp.float32) + b3_ref[0]
    o_ref[...] = (1.0 / (1.0 + jnp.exp(-z))).astype(o_ref.dtype)


@functools.partial(jax.jit, static_argnames=("state_dim", "action_dim", "tb_max"))
def q_forward(s, a, params, xmean, xstd, *, state_dim, action_dim, tb_max=4096):
    """JAX wrapper mirroring Q.forward(s, a)."""
    s = s.reshape(-1, state_dim).astype(jnp.float32)
    a = a.reshape(-1, action_dim).astype(jnp.float32)
    B = s.shape[0]

    w1, b1, w2, b2, w3, b3 = params
    xmean = xmean.reshape(-1).astype(jnp.float32)
    xstd = xstd.reshape(-1).astype(jnp.float32)
    H = w1.shape[0]

    # Fold input normalization into fc1.
    w1_eff = w1 / xstd[None, :]                    # (H, S+A)
    b1_eff = b1 - w1_eff @ xmean                   # (H,)
    w1s = w1_eff[:, :state_dim]                    # (H, S)
    w1a = w1_eff[:, state_dim:]                    # (H, A)
    b1c = b1_eff.reshape(H, 1)
    b2c = b2.reshape(H, 1)
    w3r = w3.reshape(1, H)
    b3s = b3.reshape(1,).astype(jnp.float32)       # scalar -> SMEM

    # --- batch tile selection -------------------------------------------------
    # Small batches: a single full block.  Larger batches: a large tile
    # (multiple of 128) sized so the grid has >= 2 steps, which lets the
    # "parallel" grid axis shard work across both TensorCores on v7x while
    # still amortizing the ~0.35 us per-step fixed cost.
    if B <= 256:
        TB = B
    else:
        TB = max(128, min(tb_max, _round_up(pl.cdiv(B, 2), 128)))
    grid = (pl.cdiv(B, TB),)

    # --- scoped-VMEM estimate (lane/sublane padded, double-buffered) ----------
    def pad_bytes(r, c):
        return _round_up(r, 8) * _round_up(c, 128) * 4

    est = 2 * (pad_bytes(TB, state_dim) + pad_bytes(TB, action_dim))   # inputs
    est += 2 * pad_bytes(1, TB)                                        # output
    est += 2 * (pad_bytes(H, state_dim) + pad_bytes(H, action_dim)
                + pad_bytes(H, H) + pad_bytes(1, H) + 2 * pad_bytes(H, 1))
    est += 4 * pad_bytes(H, TB)                                        # h1/h2 temps
    vmem_limit = int(min(max(est + (4 << 20), 16 << 20), 40 << 20))

    flops = 2 * B * (H * (state_dim + action_dim) + H * H + H)
    bytes_accessed = 4 * (B * (state_dim + action_dim) + B
                          + w1.size + w2.size + w3.size + 2 * H + 1)
    cost = pl.CostEstimate(flops=flops, transcendentals=B,
                           bytes_accessed=bytes_accessed)

    def resident(shape):
        # Same block every grid step -> stays VMEM-resident.
        return pl.BlockSpec(shape, lambda i: (0,) * len(shape))

    out = pl.pallas_call(
        q_kernel,
        out_shape=jax.ShapeDtypeStruct((1, B), jnp.float32),
        grid=grid,
        in_specs=[
            pl.BlockSpec((TB, state_dim), lambda i: (i, 0)),     # s, batch-tiled
            pl.BlockSpec((TB, action_dim), lambda i: (i, 0)),    # a, batch-tiled
            resident((H, state_dim)),                            # w1s'
            resident((H, action_dim)),                           # w1a'
            resident((H, 1)),                                    # b1'
            resident((H, H)),                                    # w2
            resident((H, 1)),                                    # b2
            resident((1, H)),                                    # w3
            pl.BlockSpec(memory_space=pltpu.MemorySpace.SMEM),   # b3 scalar
        ],
        out_specs=pl.BlockSpec((1, TB), lambda i: (0, i)),       # lane-dense output
        compiler_params=pltpu.CompilerParams(
            dimension_semantics=("parallel",),
            vmem_limit_bytes=vmem_limit),
        cost_estimate=cost,
    )(s, a, w1s, w1a, b1c, w2, b2c, w3r, b3s)

    return out.reshape(B, 1)


# ---------------------------------------------------------------------------
# Parameter init + pure-JAX reference (mirrors the PyTorch module exactly)
# ---------------------------------------------------------------------------
def xavier_uniform(key, out_f, in_f):
    limit = jnp.sqrt(6.0 / (in_f + out_f))
    return jax.random.uniform(key, (out_f, in_f), jnp.float32, -limit, limit)


def init_q_params(key, state_dim, action_dim, hidden_dim):
    d_in = state_dim + action_dim
    k1, k2, k3 = jax.random.split(key, 3)
    w1 = xavier_uniform(k1, hidden_dim, d_in)
    b1 = jnp.zeros((hidden_dim,), jnp.float32)
    w2 = xavier_uniform(k2, hidden_dim, hidden_dim)
    b2 = jnp.zeros((hidden_dim,), jnp.float32)
    w3 = xavier_uniform(k3, 1, hidden_dim)
    b3 = jnp.zeros((1,), jnp.float32)
    return (w1, b1, w2, b2, w3, b3)


def q_reference(s, a, params, xmean, xstd, state_dim, action_dim):
    s = s.reshape(-1, state_dim)
    a = a.reshape(-1, action_dim)
    x = jnp.concatenate([s, a], axis=-1)
    x = (x - xmean) / xstd
    w1, b1, w2, b2, w3, b3 = params
    x = jax.nn.relu(x @ w1.T + b1)
    x = jax.nn.relu(x @ w2.T + b2)
    return jax.nn.sigmoid(x @ w3.T + b3)


if __name__ == "__main__":
    state_dim, action_dim, hidden_dim = 6, 2, 32

    key = jax.random.PRNGKey(0)
    kp, km, k1, k2, k3, k4 = jax.random.split(key, 6)

    params = init_q_params(kp, state_dim, action_dim, hidden_dim)
    xmean = jax.random.normal(km, (state_dim + action_dim,), jnp.float32) * 0.1
    xstd = jnp.ones((state_dim + action_dim,), jnp.float32) * 1.5

    # --- small batch: single full block, grid=(1,) ---
    batch = 8
    s = jax.random.normal(k1, (batch, state_dim), jnp.float32)
    a = jax.random.normal(k2, (batch, action_dim), jnp.float32)
    out = q_forward(s, a, params, xmean, xstd,
                    state_dim=state_dim, action_dim=action_dim)
    out = jax.block_until_ready(out)
    ref = q_reference(s, a, params, xmean, xstd, state_dim, action_dim)
    assert out.shape == (batch, 1), out.shape
    assert jnp.allclose(out, ref, atol=1e-4, rtol=1e-4), (out, ref)

    # --- larger batch: >=2 grid steps (v7x megacore path) + partial last block ---
    batch2 = 700
    s2 = jax.random.normal(k3, (batch2, state_dim), jnp.float32)
    a2 = jax.random.normal(k4, (batch2, action_dim), jnp.float32)
    out2 = q_forward(s2, a2, params, xmean, xstd,
                     state_dim=state_dim, action_dim=action_dim)
    out2 = jax.block_until_ready(out2)
    ref2 = q_reference(s2, a2, params, xmean, xstd, state_dim, action_dim)
    assert out2.shape == (batch2, 1), out2.shape
    assert jnp.allclose(out2, ref2, atol=1e-4, rtol=1e-4), (out2, ref2)

    print("KERNEL_OK")
</pallas_src>

<mosaic_0001>
module attributes {stable_mosaic.version = 11 : i64} {
  func.func @q_kernel(%arg0: i32, %arg1: memref<8x6xf32, #tpu.memory_space<vmem>>, %arg2: memref<8x2xf32, #tpu.memory_space<vmem>>, %arg3: memref<32x6xf32, #tpu.memory_space<vmem>>, %arg4: memref<32x2xf32, #tpu.memory_space<vmem>>, %arg5: memref<32x1xf32, #tpu.memory_space<vmem>>, %arg6: memref<32x32xf32, #tpu.memory_space<vmem>>, %arg7: memref<32x1xf32, #tpu.memory_space<vmem>>, %arg8: memref<1x32xf32, #tpu.memory_space<vmem>>, %arg9: memref<1xf32, #tpu.memory_space<smem>>, %arg10: memref<1x8xf32, #tpu.memory_space<vmem>>) attributes {dimension_semantics = [#tpu.dimension_semantics<parallel>], iteration_bounds = array<i64: 1>, scalar_prefetch = 0 : i64, scratch_operands = 0 : i64, tpu.core_type = #tpu.core_type<tc>, window_params = [{transform_indices = @transform_0, window_bounds = array<i64: 8, 6>}, {transform_indices = @transform_1, window_bounds = array<i64: 8, 2>}, {pipeline_mode = #tpu.pipeline_mode<synchronous>, transform_indices = @transform_2, window_bounds = array<i64: 32, 6>}, {pipeline_mode = #tpu.pipeline_mode<synchronous>, transform_indices = @transform_3, window_bounds = array<i64: 32, 2>}, {pipeline_mode = #tpu.pipeline_mode<synchronous>, transform_indices = @transform_4, window_bounds = array<i64: 32, 1>}, {pipeline_mode = #tpu.pipeline_mode<synchronous>, transform_indices = @transform_5, window_bounds = array<i64: 32, 32>}, {pipeline_mode = #tpu.pipeline_mode<synchronous>, transform_indices = @transform_6, window_bounds = array<i64: 32, 1>}, {pipeline_mode = #tpu.pipeline_mode<synchronous>, transform_indices = @transform_7, window_bounds = array<i64: 1, 32>}, {transform_indices = @transform_8, window_bounds = array<i64: 1>}, {transform_indices = @transform_9, window_bounds = array<i64: 1, 8>}]} {
    %c0 = arith.constant 0 : index
    %c0_0 = arith.constant 0 : index
    %0 = vector.load %arg3[%c0, %c0_0] : memref<32x6xf32, #tpu.memory_space<vmem>>, vector<32x6xf32>
    %c0_1 = arith.constant 0 : index
    %c0_2 = arith.constant 0 : index
    %1 = vector.load %arg1[%c0_1, %c0_2] : memref<8x6xf32, #tpu.memory_space<vmem>>, vector<8x6xf32>
    %cst = arith.constant dense<0.000000e+00> : vector<32x8xf32>
    %2 = tpu.matmul %0, %1, %cst {dimension_numbers = #tpu.dot_dimension_numbers<[1], [1], [0], [0], [0, 0, 1, 0], [], []>} : vector<32x6xf32>, vector<8x6xf32>, vector<32x8xf32> -> vector<32x8xf32>
    %c0_3 = arith.constant 0 : index
    %c0_4 = arith.constant 0 : index
    %3 = vector.load %arg4[%c0_3, %c0_4] : memref<32x2xf32, #tpu.memory_space<vmem>>, vector<32x2xf32>
    %c0_5 = arith.constant 0 : index
    %c0_6 = arith.constant 0 : index
    %4 = vector.load %arg2[%c0_5, %c0_6] : memref<8x2xf32, #tpu.memory_space<vmem>>, vector<8x2xf32>
    %cst_7 = arith.constant dense<0.000000e+00> : vector<32x8xf32>
    %5 = tpu.matmul %3, %4, %cst_7 {dimension_numbers = #tpu.dot_dimension_numbers<[1], [1], [0], [0], [0, 0, 1, 0], [], []>} : vector<32x2xf32>, vector<8x2xf32>, vector<32x8xf32> -> vector<32x8xf32>
    %6 = arith.addf %2, %5 : vector<32x8xf32>
    %c0_8 = arith.constant 0 : index
    %c0_9 = arith.constant 0 : index
    %7 = vector.load %arg5[%c0_8, %c0_9] : memref<32x1xf32, #tpu.memory_space<vmem>>, vector<32x1xf32>
    %8 = vector.broadcast %7 : vector<32x1xf32> to vector<32x8xf32>
    %9 = arith.addf %6, %8 : vector<32x8xf32>
    %cst_10 = arith.constant 0.000000e+00 : f32
    %10 = vector.broadcast %cst_10 : f32 to vector<32x8xf32>
    %11 = arith.maximumf %9, %10 : vector<32x8xf32>
    %c0_11 = arith.constant 0 : index
    %c0_12 = arith.constant 0 : index
    %12 = vector.load %arg6[%c0_11, %c0_12] : memref<32x32xf32, #tpu.memory_space<vmem>>, vector<32x32xf32>
    %cst_13 = arith.constant dense<0.000000e+00> : vector<32x8xf32>
    %13 = tpu.matmul %12, %11, %cst_13 {dimension_numbers = #tpu.dot_dimension_numbers<[1], [0], [0], [1], [0, 0, 1, 1], [], []>} : vector<32x32xf32>, vector<32x8xf32>, vector<32x8xf32> -> vector<32x8xf32>
    %c0_14 = arith.constant 0 : index
    %c0_15 = arith.constant 0 : index
    %14 = vector.load %arg7[%c0_14, %c0_15] : memref<32x1xf32, #tpu.memory_space<vmem>>, vector<32x1xf32>
    %15 = vector.broadcast %14 : vector<32x1xf32> to vector<32x8xf32>
    %16 = arith.addf %13, %15 : vector<32x8xf32>
    %cst_16 = arith.constant 0.000000e+00 : f32
    %17 = vector.broadcast %cst_16 : f32 to vector<32x8xf32>
    %18 = arith.maximumf %16, %17 : vector<32x8xf32>
    %c0_17 = arith.constant 0 : index
    %c0_18 = arith.constant 0 : index
    %19 = vector.load %arg8[%c0_17, %c0_18] : memref<1x32xf32, #tpu.memory_space<vmem>>, vector<1x32xf32>
    %cst_19 = arith.constant dense<0.000000e+00> : vector<1x8xf32>
    %20 = tpu.matmul %19, %18, %cst_19 {dimension_numbers = #tpu.dot_dimension_numbers<[1], [0], [0], [1], [0, 0, 1, 1], [], []>} : vector<1x32xf32>, vector<32x8xf32>, vector<1x8xf32> -> vector<1x8xf32>
    %c0_20 = arith.constant 0 : index
    %21 = memref.load %arg9[%c0_20] : memref<1xf32, #tpu.memory_space<smem>>
    %22 = vector.broadcast %21 : f32 to vector<1x8xf32>
    %23 = arith.addf %20, %22 : vector<1x8xf32>
    %cst_21 = arith.constant 0.000000e+00 : f32
    %24 = vector.broadcast %cst_21 : f32 to vector<1x8xf32>
    %25 = arith.subf %24, %23 : vector<1x8xf32>
    %26 = math.exp %25 : vector<1x8xf32>
    %cst_22 = arith.constant 1.000000e+00 : f32
    %27 = vector.broadcast %cst_22 : f32 to vector<1x8xf32>
    %28 = arith.addf %27, %26 : vector<1x8xf32>
    %cst_23 = arith.constant 1.000000e+00 : f32
    %29 = vector.broadcast %cst_23 : f32 to vector<1x8xf32>
    %30 = arith.divf %29, %28 : vector<1x8xf32>
    %c0_24 = arith.constant 0 : index
    %c0_25 = arith.constant 0 : index
    %31 = vector.load %arg10[%c0_24, %c0_25] : memref<1x8xf32, #tpu.memory_space<vmem>>, vector<1x8xf32>
    tpu.vector_store %arg10[%c0_24, %c0_25], %30 {strides = array<i32>} : memref<1x8xf32, #tpu.memory_space<vmem>>, vector<1x8xf32>,
    return
  }
  func.func @transform_0(%arg0: i32) -> (i32, i32) {
    %c0_i32 = arith.constant 0 : i32
    %c0_i32_0 = arith.constant 0 : i32
    return %arg0, %c0_i32 : i32, i32
  }
  func.func @transform_1(%arg0: i32) -> (i32, i32) {
    %c0_i32 = arith.constant 0 : i32
    %c0_i32_0 = arith.constant 0 : i32
    return %arg0, %c0_i32 : i32, i32
  }
  func.func @transform_2(%arg0: i32) -> (i32, i32) {
    %c0_i32 = arith.constant 0 : i32
    %c0_i32_0 = arith.constant 0 : i32
    %c0_i32_1 = arith.constant 0 : i32
    return %c0_i32, %c0_i32_0 : i32, i32
  }
  func.func @transform_3(%arg0: i32) -> (i32, i32) {
    %c0_i32 = arith.constant 0 : i32
    %c0_i32_0 = arith.constant 0 : i32
    %c0_i32_1 = arith.constant 0 : i32
    return %c0_i32, %c0_i32_0 : i32, i32
  }
  func.func @transform_4(%arg0: i32) -> (i32, i32) {
    %c0_i32 = arith.constant 0 : i32
    %c0_i32_0 = arith.constant 0 : i32
    %c0_i32_1 = arith.constant 0 : i32
    return %c0_i32, %c0_i32_0 : i32, i32
  }
  func.func @transform_5(%arg0: i32) -> (i32, i32) {
    %c0_i32 = arith.constant 0 : i32
    %c0_i32_0 = arith.constant 0 : i32
    %c0_i32_1 = arith.constant 0 : i32
    return %c0_i32, %c0_i32_0 : i32, i32
  }
  func.func @transform_6(%arg0: i32) -> (i32, i32) {
    %c0_i32 = arith.constant 0 : i32
    %c0_i32_0 = arith.constant 0 : i32
    %c0_i32_1 = arith.constant 0 : i32
    return %c0_i32, %c0_i32_0 : i32, i32
  }
  func.func @transform_7(%arg0: i32) -> (i32, i32) {
    %c0_i32 = arith.constant 0 : i32
    %c0_i32_0 = arith.constant 0 : i32
    %c0_i32_1 = arith.constant 0 : i32
    return %c0_i32, %c0_i32_0 : i32, i32
  }
  func.func @transform_8(%arg0: i32) -> i32 {
    %c0_i32 = arith.constant 0 : i32
    %c0_i32_0 = arith.constant 0 : i32
    return %c0_i32 : i32
  }
  func.func @transform_9(%arg0: i32) -> (i32, i32) {
    %c0_i32 = arith.constant 0 : i32
    %c0_i32_0 = arith.constant 0 : i32
    return %c0_i32, %arg0 : i32, i32
  }
}

</mosaic_0001>

<llo_original>
// kernel: q_forward.1
$region0: #{q_forward.1}
  #allocation0 [shape = 'u32[]', space=smem, size = 0x4, offset = 0x4, fixed_abs, tag = 'smem constant byte address 0x4 - core index']
  #allocation1 [shape = 'u32[72,128]{1,0:T(1,128)}', space=vmem, size = 0x9000, scoped, tag = 'internal scratch']
  #allocation2 [shape = 'f32[1]{0:T(128)S(6)}', space=smem, size = 0x200, scoped, tag = 'scoped memory for q_forward.1']
  %s0 = inlined_call_operand.vmem [shape: f32[8,6], index: 0, kind: input, shape index: {}]
  %s1 = inlined_call_operand.vmem [shape: f32[8,2], index: 1, kind: input, shape index: {}]
  %s2 = inlined_call_operand.vmem [shape: f32[32,6], index: 2, kind: input, shape index: {}]
  %s3 = inlined_call_operand.vmem [shape: f32[32,2], index: 3, kind: input, shape index: {}]
  %s4 = inlined_call_operand.vmem [shape: f32[32,1], index: 4, kind: input, shape index: {}]
  %s5 = inlined_call_operand.vmem [shape: f32[32,32], index: 5, kind: input, shape index: {}]
  %s6 = inlined_call_operand.vmem [shape: f32[32,1], index: 6, kind: input, shape index: {}]
  %s7 = inlined_call_operand.vmem [shape: f32[1,32], index: 7, kind: input, shape index: {}]
  %s8 = inlined_call_operand.<no memory space> [shape: f32[1], index: 8, kind: input, shape index: {}]
  %s9 = inlined_call_operand.hbm [shape: f32[1,8], index: 9, kind: output, shape index: {}]
  %s10 = sld [smem:[#allocation0]]
  $region46: #{q_forward.1} parent=0
    _
  %s12 = ssub.s32 1, %s10
  %s13 = scalar_select 0, %s12, %s10
  %14 = sst [smem:[#allocation2]] %s8
  $region1: #{q_forward.1} parent=0
    #allocation3 [shape = 'u8[512]{0}', space=vmem, size = 0x400, scoped, tag = 'output window, operand 0, single buffered']
    #allocation4 [shape = 's32[1]{0}', space=sflag, size = 0x4, scoped, tag = 'scoped memory for q_forward.1']
    %15 = vsyncpa [#allocation4], 0
    // Predicated region
    $region2: #{q_forward.1} parent=1 // pred_check
      _
    $region3: #{q_forward.1} parent=1 // pred_check_branch
      %17 = sbr.rel (0) target = $region5
    $region4: #{q_forward.1} parent=1 // pred_region
      _
    $region5: #{q_forward.1} parent=1 // pred_fallthru
      _
    // Predicated region
    $region6: #{q_forward.1} parent=1 // pred_check
      _
    $region7: #{q_forward.1} parent=1 // pred_check_branch
      %19 = sbr.rel (0) target = $region9
    $region8: #{q_forward.1} parent=1 // pred_region
      _
    $region9: #{q_forward.1} parent=1 // pred_fallthru
      _
    // Predicated region
    $region10: #{q_forward.1} parent=1 // pred_check
      _
    $region11: #{q_forward.1} parent=1 // pred_check_branch
      %21 = sbr.rel (0) target = $region13
    $region12: #{q_forward.1} parent=1 // pred_region
      _
    $region13: #{q_forward.1} parent=1 // pred_fallthru
      _
    // Predicated region
    $region14: #{q_forward.1} parent=1 // pred_check
      _
    $region15: #{q_forward.1} parent=1 // pred_check_branch
      %23 = sbr.rel (0) target = $region17
    $region16: #{q_forward.1} parent=1 // pred_region
      _
    $region17: #{q_forward.1} parent=1 // pred_fallthru
      _
    // Predicated region
    $region18: #{q_forward.1} parent=1 // pred_check
      _
    $region19: #{q_forward.1} parent=1 // pred_check_branch
      %25 = sbr.rel (0) target = $region21
    $region20: #{q_forward.1} parent=1 // pred_region
      _
    $region21: #{q_forward.1} parent=1 // pred_fallthru
      _
    // Predicated region
    $region22: #{q_forward.1} parent=1 // pred_check
      _
    $region23: #{q_forward.1} parent=1 // pred_check_branch
      %27 = sbr.rel (0) target = $region25
    $region24: #{q_forward.1} parent=1 // pred_region
      _
    $region25: #{q_forward.1} parent=1 // pred_fallthru
      _
    // Predicated region
    $region26: #{q_forward.1} parent=1 // pred_check
      _
    $region27: #{q_forward.1} parent=1 // pred_check_branch
      %29 = sbr.rel (0) target = $region29
    $region28: #{q_forward.1} parent=1 // pred_region
      _
    $region29: #{q_forward.1} parent=1 // pred_fallthru
      _
    // Predicated region
    $region30: #{q_forward.1} parent=1 // pred_check
      _
    $region31: #{q_forward.1} parent=1 // pred_check_branch
      %31 = sbr.rel (0) target = $region33
    $region32: #{q_forward.1} parent=1 // pred_region
      _
    $region33: #{q_forward.1} parent=1 // pred_fallthru
      _
    // Predicated region
    $region34: #{q_forward.1} parent=1 // pred_check
      _
    $region35: #{q_forward.1} parent=1 // pred_check_branch
      %33 = sbr.rel (0) target = $region37
    $region36: #{q_forward.1} parent=1 // pred_region
      _
    $region37: #{q_forward.1} parent=1 // pred_fallthru
      _
    %v34 = vld [vmem:[%s2] sm:$0xff]
    %v35 = vld [vmem:[%s2 + $0x8] sm:$0xff]
    %v36 = vld [vmem:[%s2 + $0x10] sm:$0xff]
    %v37 = vld [vmem:[%s2 + $0x18] sm:$0xff]
    %v38 = vld [vmem:[%s0] sm:$0xff]
    %v39 = vld [vmem:[%s3] sm:$0xff]
    %v40 = vld [vmem:[%s3 + $0x8] sm:$0xff]
    %v41 = vld [vmem:[%s3 + $0x10] sm:$0xff]
    %v42 = vld [vmem:[%s3 + $0x18] sm:$0xff]
    %v43 = vld [vmem:[%s1] sm:$0xff]
    %vm44 = vcmask 15360
    %v46 = vsel %vm44, %v39, 0
    %v49 = vsel %vm44, %v40, 0
    %v52 = vsel %vm44, %v41, 0
    %v55 = vsel %vm44, %v42, 0
    %v58 = vsel %vm44, %v43, 0
    %60 = vmatpush.xpose.msra.mxu0 0.0
    %61 = vmatpush.xpose.msra.mxu0 0.0
    %62 = vmatpush.xpose.msra.mxu0 0.0
    %63 = vmatpush.xpose.msra.mxu0 0.0
    %64 = vmatpush.xpose.msra.mxu0 0.0
    %65 = vmatpush.xpose.msra.mxu0 0.0
    %66 = vmatpush.xpose.msra.mxu0 0.0
    %67 = vmatpush.xpose.msra.mxu0 0.0
    %68 = vmatpush.xpose.msra.mxu0 0.0
    %69 = vmatpush.xpose.msra.mxu0 0.0
    %70 = vmatpush.xpose.msra.mxu0 0.0
    %71 = vmatpush.xpose.msra.mxu0 0.0
    %72 = vmatpush.xpose.msra.mxu0 0.0
    %73 = vmatpush.xpose.msra.mxu0 0.0
    %74 = vmatpush.xpose.msra.mxu0 0.0
    %75 = vmatpush.xpose.msra.mxu0 %v58
    %76 = vmatmul.f32.gmra.mxu0 %v46
    %v77 = vpop.f32.mrf.mxu0
    %v78 = vadd.f32 0.0, %v77
    %79 = vmatmul.f32.gmra.mxu0 %v49
    %v80 = vpop.f32.mrf.mxu0
    %v81 = vadd.f32 0.0, %v80
    %82 = vmatmul.f32.gmra.mxu0 %v52
    %v83 = vpop.f32.mrf.mxu0
    %v84 = vadd.f32 0.0, %v83
    %85 = vmatmul.f32.gmra.mxu0 %v55
    %v86 = vpop.f32.mrf.mxu0
    %v87 = vadd.f32 0.0, %v86
    %88 = vdwg.mxu0
    %vm89 = vcmask 48128
    %v91 = vsel %vm89, %v34, 0
    %v94 = vsel %vm89, %v35, 0
    %v97 = vsel %vm89, %v36, 0
    %v100 = vsel %vm89, %v37, 0
    %v103 = vsel %vm89, %v38, 0
    %105 = vmatpush.xpose.msra.mxu0 0.0
    %106 = vmatpush.xpose.msra.mxu0 0.0
    %107 = vmatpush.xpose.msra.mxu0 0.0
    %108 = vmatpush.xpose.msra.mxu0 0.0
    %109 = vmatpush.xpose.msra.mxu0 0.0
    %110 = vmatpush.xpose.msra.mxu0 0.0
    %111 = vmatpush.xpose.msra.mxu0 0.0
    %112 = vmatpush.xpose.msra.mxu0 0.0
    %113 = vmatpush.xpose.msra.mxu0 0.0
    %114 = vmatpush.xpose.msra.mxu0 0.0
    %115 = vmatpush.xpose.msra.mxu0 0.0
    %116 = vmatpush.xpose.msra.mxu0 0.0
    %117 = vmatpush.xpose.msra.mxu0 0.0
    %118 = vmatpush.xpose.msra.mxu0 0.0
    %119 = vmatpush.xpose.msra.mxu0 0.0
    %120 = vmatpush.xpose.msra.mxu0 %v103
    %121 = vmatmul.f32.gmra.mxu0 %v91
    %v122 = vpop.f32.mrf.mxu0
    %v123 = vadd.f32 %v78, %v122
    %124 = vmatmul.f32.gmra.mxu0 %v94
    %v125 = vpop.f32.mrf.mxu0
    %v126 = vadd.f32 %v81, %v125
    %127 = vmatmul.f32.gmra.mxu0 %v97
    %v128 = vpop.f32.mrf.mxu0
    %v129 = vadd.f32 %v84, %v128
    %130 = vmatmul.f32.gmra.mxu0 %v100
    %v131 = vpop.f32.mrf.mxu0
    %v132 = vadd.f32 %v87, %v131
    %133 = vdwg.mxu0
    %v134 = vld [vmem:[%s4] sm:$0xff]
    %v135 = vld [vmem:[%s4 + $0x8] sm:$0xff]
    %v136 = vld [vmem:[%s4 + $0x10] sm:$0xff]
    %v137 = vld [vmem:[%s4 + $0x18] sm:$0xff]
    %139 = vset.pattern.permute.xlu0 0
    %140 = vperm.xlu0 %139, %v134
    %v141 = vpop.permute.xlu0 %140
    %144 = vset.pattern.permute.xlu0 0
    %145 = vperm.xlu0 %144, %v135
    %v146 = vpop.permute.xlu0 %145
    %149 = vset.pattern.permute.xlu0 0
    %150 = vperm.xlu0 %149, %v136
    %v151 = vpop.permute.xlu0 %150
    %154 = vset.pattern.permute.xlu0 0
    %155 = vperm.xlu0 %154, %v137
    %v156 = vpop.permute.xlu0 %155
    %v158 = vadd.f32 %v123, %v141
    %v159 = vadd.f32 %v126, %v146
    %v160 = vadd.f32 %v129, %v151
    %v161 = vadd.f32 %v132, %v156
    %v162 = vmax.f32 %v158, 0.0
    %v163 = vmax.f32 %v159, 0.0
    %v164 = vmax.f32 %v160, 0.0
    %v165 = vmax.f32 %v161, 0.0
    %v166 = vld [vmem:[%s5] sm:$0xff]
    %v167 = vld [vmem:[%s5 + $0x8] sm:$0xff]
    %v168 = vld [vmem:[%s5 + $0x10] sm:$0xff]
    %v169 = vld [vmem:[%s5 + $0x18] sm:$0xff]
    %v170 = vld [vmem:[%s6] sm:$0xff]
    %v171 = vld [vmem:[%s6 + $0x8] sm:$0xff]
    %v172 = vld [vmem:[%s6 + $0x10] sm:$0xff]
    %v173 = vld [vmem:[%s6 + $0x18] sm:$0xff]
    %175 = vset.pattern.permute.xlu0 0
    %176 = vperm.xlu0 %175, %v170
    %v177 = vpop.permute.xlu0 %176
    %180 = vset.pattern.permute.xlu0 0
    %181 = vperm.xlu0 %180, %v171
    %v182 = vpop.permute.xlu0 %181
    %185 = vset.pattern.permute.xlu0 0
    %186 = vperm.xlu0 %185, %v172
    %v187 = vpop.permute.xlu0 %186
    %190 = vset.pattern.permute.xlu0 0
    %191 = vperm.xlu0 %190, %v173
    %v192 = vpop.permute.xlu0 %191
    %vm194 = vcmask 261120
    %v196 = vsel %vm194, %v166, 0
    %v199 = vsel %vm194, %v167, 0
    %v202 = vsel %vm194, %v168, 0
    %v205 = vsel %vm194, %v169, 0
    %207 = vmatpush.msra.mxu0 0.0
    %208 = vmatpush.msra.mxu0 0.0
    %209 = vmatpush.msra.mxu0 0.0
    %210 = vmatpush.msra.mxu0 0.0
    %211 = vmatpush.msra.mxu0 0.0
    %212 = vmatpush.msra.mxu0 0.0
    %213 = vmatpush.msra.mxu0 0.0
    %214 = vmatpush.msra.mxu0 0.0
    %215 = vmatpush.msra.mxu0 0.0
    %216 = vmatpush.msra.mxu0 0.0
    %217 = vmatpush.msra.mxu0 0.0
    %218 = vmatpush.msra.mxu0 0.0
    %219 = vmatpush.msra.mxu0 %v165
    %220 = vmatpush.msra.mxu0 %v164
    %221 = vmatpush.msra.mxu0 %v163
    %222 = vmatpush.msra.mxu0 %v162
    %223 = vmatmul.f32.gmra.mxu0 %v196
    %v224 = vpop.f32.mrf.mxu0
    %v225 = vadd.f32 %v177, %v224
    %226 = vmatmul.f32.gmra.mxu0 %v199
    %v227 = vpop.f32.mrf.mxu0
    %v228 = vadd.f32 %v182, %v227
    %229 = vmatmul.f32.gmra.mxu0 %v202
    %v230 = vpop.f32.mrf.mxu0
    %v231 = vadd.f32 %v187, %v230
    %232 = vmatmul.f32.gmra.mxu0 %v205
    %v233 = vpop.f32.mrf.mxu0
    %v234 = vadd.f32 %v192, %v233
    %235 = vdwg.mxu0
    %v236 = vmax.f32 %v225, 0.0
    %v237 = vmax.f32 %v228, 0.0
    %v238 = vmax.f32 %v231, 0.0
    %v239 = vmax.f32 %v234, 0.0
    %v240 = vld [vmem:[%s7] sm:$0x1]
    %s241 = sld [smem:[#allocation2]]
    %v242 = vstv %s241
    %v244 = vsel %vm194, %v240, 0
    %246 = vmatpush.msra.mxu0 0.0
    %247 = vmatpush.msra.mxu0 0.0
    %248 = vmatpush.msra.mxu0 0.0
    %249 = vmatpush.msra.mxu0 0.0
    %250 = vmatpush.msra.mxu0 0.0
    %251 = vmatpush.msra.mxu0 0.0
    %252 = vmatpush.msra.mxu0 0.0
    %253 = vmatpush.msra.mxu0 0.0
    %254 = vmatpush.msra.mxu0 0.0
    %255 = vmatpush.msra.mxu0 0.0
    %256 = vmatpush.msra.mxu0 0.0
    %257 = vmatpush.msra.mxu0 0.0
    %258 = vmatpush.msra.mxu0 %v239
    %259 = vmatpush.msra.mxu0 %v238
    %260 = vmatpush.msra.mxu0 %v237
    %261 = vmatpush.msra.mxu0 %v236
    %262 = vmatmul.f32.gmra.mxu0 %v244
    %v263 = vpop.f32.mrf.mxu0
    %v264 = vadd.f32 %v242, %v263
    %265 = vdwg.mxu0
    %v266 = vsub.f32 0.0, %v264
    %v267 = vmul.f32 %v266, 1.442695
    %v268 = vpow.pop %v267
    %v269 = vadd.f32 %v268, 1.0
    %v270 = vrcp.pop %v269
    %v271 = vmul.f32 %v269, %v270
    %v272 = vsub.f32 1.0, %v271
    %v273 = vmul.f32 %v270, %v272
    %v274 = vadd.f32 %v270, %v273
    %vm275 = vweird.f32 %v269
    %vm276 = vweird.f32 %v270
    %vm277 = vmor %vm275, %vm276
    %v278 = vsel %vm277, %v270, %v274
    %v279 = vand.u32 2147483647, %v269
    %vm280 = vcmp.eq.f32.partialorder %v279, 8.507059e+37
    %v281 = vand.u32 %v269, 2147483648
    %v282 = vor.u32 1.1754944e-38, %v281
    %v283 = vsel %vm280, %v282, %v278
    %v284 = vmul.f32 1.0, %v283
    %vm285 = vcmask 57344
    %286 = vst.msk [vmem:[#allocation3] sm:$0x1] %vm285, %v284
    // Predicated region
    $region38: #{q_forward.1} parent=1 // pred_check
      _
    $region39: #{q_forward.1} parent=1 // pred_check_branch
      %288 = sbr.rel (0) target = $region41
    $region40: #{q_forward.1} parent=1 // pred_region
      %290 = vsyncadd [#allocation4], 0
      %s292 = sshll.u32 [#allocation3], 4
      %s293 = int_to_ptr.vmem [resolvable:$true] %s292
      %s294 = sshll.u32 %s9, 4
      %s295 = int_to_ptr.hbm [resolvable:$true] %s294
      %297 = dma.vmem_to_hbm [thread:$0]  %s293, 16, %s295, [#allocation4]
    $region41: #{q_forward.1} parent=1 // pred_fallthru
      _
    // Predicated region
    $region42: #{q_forward.1} parent=1 // pred_check
      _
    $region43: #{q_forward.1} parent=1 // pred_check_branch
      %299 = sbr.rel (0) target = $region45
    $region44: #{q_forward.1} parent=1 // pred_region
      %301 = dma.done [#allocation4], 16
    $region45: #{q_forward.1} parent=1 // pred_fallthru
      _
    %302 = vsyncpa [#allocation4], 1

</llo_original>
